<compile_context>
chip_gen: v6e
topology: v6e:2x2x1
jax: 0.10.0
libtpu: 0.0.40
codegen_flags: <defaults>
</compile_context>

<pallas_src>
import numpy as np
import jax
import jax.numpy as jnp
from jax import lax
from jax.experimental import pallas as pl
from jax.experimental.pallas import tpu as pltpu

NPAD = 128          # padded number of terms (bonds/angles/torsions) per molecule
N_GEO_ROWS = 27     # 6 bond-xyz + 9 angle-xyz + 12 torsion-xyz rows
N_PAR_ROWS = 11     # 3 bond + 3 angle + 5 torsion parameter rows
_EPS = 1e-12


# ---------------------------------------------------------------------------
# Pallas kernel: full local energy for TB molecules per grid step
# ---------------------------------------------------------------------------
def _local_energy_kernel(geo_ref, par_ref, out_ref):
    # geo_ref: (N_GEO_ROWS, TB, NPAD), par_ref: (N_PAR_ROWS, TB, NPAD)
    # out_ref: (TB, 1)
    def g(r):
        return geo_ref[r]          # (TB, NPAD)

    def p(r):
        return par_ref[r]          # (TB, NPAD)

    def vec3(r):
        return (g(r), g(r + 1), g(r + 2))

    def sub(a, b):
        return (a[0] - b[0], a[1] - b[1], a[2] - b[2])

    def dot(a, b):
        return a[0] * b[0] + a[1] * b[1] + a[2] * b[2]

    def cross(a, b):
        return (a[1] * b[2] - a[2] * b[1],
                a[2] * b[0] - a[0] * b[2],
                a[0] * b[1] - a[1] * b[0])

    # ---- bonds: E = sum_b k_b * (|r_ij| - r0)^2 -----------------------------
    d = sub(vec3(3), vec3(0))
    r = jnp.sqrt(dot(d, d) + _EPS)
    e_bond = p(2) * p(0) * (r - p(1)) ** 2            # (TB, NPAD), masked

    # ---- angles: E = sum_a k_a * (cos(theta) - cos(theta0))^2 ---------------
    # TODO(synk): exact le.angles_energy functional form unavailable
    # (cosine-harmonic angle potential used; avoids arccos on-TPU).
    pc = vec3(9)
    u = sub(vec3(6), pc)
    v = sub(vec3(12), pc)
    cos_t = dot(u, v) * lax.rsqrt(dot(u, u) * dot(v, v) + _EPS)
    e_ang = p(5) * p(3) * (cos_t - p(4)) ** 2

    # ---- torsions: E = sum_t V * (1 + cos(n*phi - gamma)) -------------------
    q1, q2, q3, q4 = vec3(15), vec3(18), vec3(21), vec3(24)
    b1 = sub(q2, q1)
    b2 = sub(q3, q2)
    b3 = sub(q4, q3)
    n1 = cross(b1, b2)
    n2 = cross(b2, b3)
    x = dot(n1, n2)
    y = dot(cross(n1, n2), b2) * lax.rsqrt(dot(b2, b2) + _EPS)
    inv = lax.rsqrt(x * x + y * y + _EPS)
    c = x * inv                                       # cos(phi)
    s = y * inv                                       # sin(phi)
    # cos/sin of n*phi via Chebyshev recurrences for n in {1,2,3,4}; no trig ops.
    # TODO(synk): multiplicities n >= 5 fall into the n=4 branch.
    c2 = 2.0 * c * c - 1.0
    s2 = 2.0 * s * c
    c3 = 2.0 * c * c2 - c
    s3 = 2.0 * c * s2 - s
    c4 = 2.0 * c * c3 - c2
    s4 = 2.0 * c * s3 - s2
    n_per = p(7)
    cn = jnp.where(n_per >= 3.5, c4,
         jnp.where(n_per >= 2.5, c3,
         jnp.where(n_per >= 1.5, c2, c)))
    sn = jnp.where(n_per >= 3.5, s4,
         jnp.where(n_per >= 2.5, s3,
         jnp.where(n_per >= 1.5, s2, s)))
    cos_nphi_m_g = cn * p(8) + sn * p(9)              # cos(n*phi - gamma)
    e_tor = p(10) * p(6) * (1.0 + cos_nphi_m_g)

    # single cross-lane reduction over terms; padding lanes are masked to 0
    e_terms = e_bond + e_ang + e_tor                  # (TB, NPAD)
    out_ref[...] = jnp.sum(e_terms, axis=-1, keepdims=True)


def _pallas_energy(geo, par, tb):
    b_pad = geo.shape[1]
    out = pl.pallas_call(
        _local_energy_kernel,
        out_shape=jax.ShapeDtypeStruct((b_pad, 1), jnp.float32),
        grid=(b_pad // tb,),
        in_specs=[
            pl.BlockSpec((N_GEO_ROWS, tb, NPAD), lambda i: (0, i, 0)),
            pl.BlockSpec((N_PAR_ROWS, tb, NPAD), lambda i: (0, i, 0)),
        ],
        out_specs=pl.BlockSpec((tb, 1), lambda i: (i, 0)),
        compiler_params=pltpu.CompilerParams(
            dimension_semantics=("parallel",)),
    )(geo, par)
    return out[:, 0]


# ---------------------------------------------------------------------------
# JAX/Pallas port of LocalEnergyOpt
# ---------------------------------------------------------------------------
class LocalEnergyOpt:
    def __init__(self, fixed_pars, opt_pars):
        self.opt_pars = jnp.asarray(opt_pars, jnp.float32)              # trainable
        self.bond_type = np.asarray(fixed_pars['bond_type'], np.float32)
        self.angle_type = np.asarray(fixed_pars['angle_type'], np.float32)
        self.tor_type = np.asarray(fixed_pars['torsion_type'], np.float32)

    def forward(self, X):
        lengths = np.asarray(X['lengths'])
        features = np.asarray(X['features'], dtype=np.float32)
        if lengths.ndim == 1:
            lengths = lengths[None]
            features = features[None]
        B = lengths.shape[0]

        # batch-tile size: up to 128 molecules per grid step, multiple of 8
        if B >= 128:
            tb = 128
        else:
            tb = max(8, -(-B // 8) * 8)
        b_pad = -(-B // tb) * tb

        bond_tbl = self.bond_type.astype(np.int64)
        ang_tbl = self.angle_type.astype(np.int64)
        tor_tbl = self.tor_type

        geo = np.zeros((N_GEO_ROWS, b_pad, NPAD), np.float32)
        bond_k_idx = np.zeros((b_pad, NPAD), np.int32)
        bond_r0_idx = np.zeros((b_pad, NPAD), np.int32)
        ang_k_idx = np.zeros((b_pad, NPAD), np.int32)
        ang_t0_idx = np.zeros((b_pad, NPAD), np.int32)
        tor_v_idx = np.zeros((b_pad, NPAD), np.int32)
        tor_n = np.zeros((b_pad, NPAD), np.float32)
        tor_cg = np.zeros((b_pad, NPAD), np.float32)
        tor_sg = np.zeros((b_pad, NPAD), np.float32)
        bond_mask = np.zeros((b_pad, NPAD), np.float32)
        ang_mask = np.zeros((b_pad, NPAD), np.float32)
        tor_mask = np.zeros((b_pad, NPAD), np.float32)

        # numpy-only unpack of the ragged per-molecule features (glue code)
        for i in range(B):
            lens = lengths[i].tolist()
            feats = features[i]
            atoms = np.array(feats[:lens[0], 0], dtype=int)  # noqa: F841
            # TODO(synk): le.* uses `atoms` for atom-type lookups; here the
            # type ids are taken from the bond/angle/torsion index rows.
            coords = feats[:lens[5], 5].reshape(-1, 3)
            bonds = np.array(feats[:lens[6], 6], dtype=int).reshape(-1, 3)
            angles = np.array(feats[:lens[7], 7], dtype=int).reshape(-1, 4)
            tors = np.array(feats[:lens[8], 8], dtype=int).reshape(-1, 5)
            nb, na, nt = bonds.shape[0], angles.shape[0], tors.shape[0]
            assert nb <= NPAD and na <= NPAD and nt <= NPAD, \
                "per-molecule term count exceeds NPAD=128"

            if nb:
                geo[0:3, i, :nb] = coords[bonds[:, 0]].T
                geo[3:6, i, :nb] = coords[bonds[:, 1]].T
                bt = bond_tbl[bonds[:, 2]]
                bond_k_idx[i, :nb] = bt[:, 0]
                bond_r0_idx[i, :nb] = bt[:, 1]
                bond_mask[i, :nb] = 1.0
            if na:
                geo[6:9, i, :na] = coords[angles[:, 0]].T
                geo[9:12, i, :na] = coords[angles[:, 1]].T
                geo[12:15, i, :na] = coords[angles[:, 2]].T
                at = ang_tbl[angles[:, 3]]
                ang_k_idx[i, :na] = at[:, 0]
                ang_t0_idx[i, :na] = at[:, 1]
                ang_mask[i, :na] = 1.0
            if nt:
                geo[15:18, i, :nt] = coords[tors[:, 0]].T
                geo[18:21, i, :nt] = coords[tors[:, 1]].T
                geo[21:24, i, :nt] = coords[tors[:, 2]].T
                geo[24:27, i, :nt] = coords[tors[:, 3]].T
                tt = tor_tbl[tors[:, 4]]
                tor_v_idx[i, :nt] = tt[:, 0].astype(np.int32)
                tor_n[i, :nt] = tt[:, 1]
                tor_cg[i, :nt] = np.cos(tt[:, 2])
                tor_sg[i, :nt] = np.sin(tt[:, 2])
                tor_mask[i, :nt] = 1.0

        # one batched gather of the trainable parameters (keeps grad flow)
        op = self.opt_pars
        k_b = op[jnp.asarray(bond_k_idx)]
        r0 = op[jnp.asarray(bond_r0_idx)]
        k_a = op[jnp.asarray(ang_k_idx)]
        cos_t0 = jnp.cos(op[jnp.asarray(ang_t0_idx)])
        v_t = op[jnp.asarray(tor_v_idx)]

        par = jnp.stack([
            k_b, r0, jnp.asarray(bond_mask),
            k_a, cos_t0, jnp.asarray(ang_mask),
            v_t, jnp.asarray(tor_n), jnp.asarray(tor_cg),
            jnp.asarray(tor_sg), jnp.asarray(tor_mask),
        ], axis=0).astype(jnp.float32)                 # (11, b_pad, NPAD)

        energy = _pallas_energy(jnp.asarray(geo), par, tb)
        return energy[:B]

    __call__ = forward


# ---------------------------------------------------------------------------
if __name__ == "__main__":
    key = jax.random.PRNGKey(0)
    k_bk, k_br, k_ak, k_at, k_tv, k_c0, k_c1 = jax.random.split(key, 7)

    # opt_pars layout: [bond_k(4), bond_r0(4), angle_k(4), angle_theta0(4), tor_V(4)]
    opt_pars = jnp.concatenate([
        jax.random.uniform(k_bk, (4,), minval=50.0, maxval=150.0),
        jax.random.uniform(k_br, (4,), minval=1.0, maxval=1.8),
        jax.random.uniform(k_ak, (4,), minval=20.0, maxval=80.0),
        jax.random.uniform(k_at, (4,), minval=1.7, maxval=2.1),
        jax.random.uniform(k_tv, (4,), minval=0.5, maxval=3.0),
    ]).astype(jnp.float32)

    fixed_pars = {
        'bond_type': np.array([[0, 4], [1, 5], [2, 6], [3, 7]], np.float32),
        'angle_type': np.array([[8, 12], [9, 13], [10, 14], [11, 15]], np.float32),
        'torsion_type': np.array([[16, 1.0, 0.0],
                                  [17, 2.0, np.pi],
                                  [18, 3.0, 0.0],
                                  [19, 1.0, np.pi]], np.float32),
    }

    # synthetic batch in the original {'lengths', 'features'} padded format
    B, L, NCOL = 2, 64, 9
    n_atoms = [16, 12]
    n_bonds = [12, 8]
    n_angles = [10, 6]
    n_tors = [8, 4]
    coord_keys = [k_c0, k_c1]

    lengths = np.zeros((B, NCOL), np.int32)
    features = np.zeros((B, L, NCOL), np.float32)
    for i in range(B):
        na_, nb_, nang_, nt_ = n_atoms[i], n_bonds[i], n_angles[i], n_tors[i]
        coords = np.asarray(jax.random.normal(coord_keys[i], (na_, 3))) * 1.5
        atoms = np.arange(na_) % 4
        bonds = np.stack([np.arange(nb_), np.arange(nb_) + 1,
                          np.arange(nb_) % 4], axis=1)
        angles = np.stack([np.arange(nang_), np.arange(nang_) + 1,
                           np.arange(nang_) + 2, np.arange(nang_) % 4], axis=1)
        tors = np.stack([np.arange(nt_), np.arange(nt_) + 1, np.arange(nt_) + 2,
                         np.arange(nt_) + 3, np.arange(nt_) % 4], axis=1)
        lengths[i] = [na_, 0, 0, 0, 0, 3 * na_, 3 * nb_, 4 * nang_, 5 * nt_]
        features[i, :na_, 0] = atoms
        features[i, :3 * na_, 5] = coords.reshape(-1)
        features[i, :3 * nb_, 6] = bonds.reshape(-1)
        features[i, :4 * nang_, 7] = angles.reshape(-1)
        features[i, :5 * nt_, 8] = tors.reshape(-1)

    model = LocalEnergyOpt(fixed_pars, opt_pars)
    energy = model({'lengths': lengths, 'features': features})
    energy = jax.block_until_ready(energy)
    assert energy.shape == (B,)
    assert bool(jnp.all(jnp.isfinite(energy)))
    print("KERNEL_OK")
</pallas_src>

<mosaic_0001>
module attributes {stable_mosaic.version = 11 : i64} {
  func.func @_local_energy_kernel(%arg0: i32, %arg1: memref<27x8x128xf32, #tpu.memory_space<vmem>>, %arg2: memref<11x8x128xf32, #tpu.memory_space<vmem>>, %arg3: memref<8x1xf32, #tpu.memory_space<vmem>>) attributes {dimension_semantics = [#tpu.dimension_semantics<parallel>], iteration_bounds = array<i64: 1>, scalar_prefetch = 0 : i64, scratch_operands = 0 : i64, tpu.core_type = #tpu.core_type<tc>, window_params = [{transform_indices = @transform_0, window_bounds = array<i64: 27, 8, 128>}, {transform_indices = @transform_1, window_bounds = array<i64: 11, 8, 128>}, {transform_indices = @transform_2, window_bounds = array<i64: 8, 1>}]} {
    %c3 = arith.constant 3 : index
    %c0 = arith.constant 0 : index
    %c0_0 = arith.constant 0 : index
    %0 = vector.load %arg1[%c3, %c0, %c0_0] : memref<27x8x128xf32, #tpu.memory_space<vmem>>, vector<1x8x128xf32>
    %1 = vector.shape_cast %0 : vector<1x8x128xf32> to vector<8x128xf32>
    %c4 = arith.constant 4 : index
    %c0_1 = arith.constant 0 : index
    %c0_2 = arith.constant 0 : index
    %2 = vector.load %arg1[%c4, %c0_1, %c0_2] : memref<27x8x128xf32, #tpu.memory_space<vmem>>, vector<1x8x128xf32>
    %3 = vector.shape_cast %2 : vector<1x8x128xf32> to vector<8x128xf32>
    %c5 = arith.constant 5 : index
    %c0_3 = arith.constant 0 : index
    %c0_4 = arith.constant 0 : index
    %4 = vector.load %arg1[%c5, %c0_3, %c0_4] : memref<27x8x128xf32, #tpu.memory_space<vmem>>, vector<1x8x128xf32>
    %5 = vector.shape_cast %4 : vector<1x8x128xf32> to vector<8x128xf32>
    %c0_5 = arith.constant 0 : index
    %c0_6 = arith.constant 0 : index
    %c0_7 = arith.constant 0 : index
    %6 = vector.load %arg1[%c0_5, %c0_6, %c0_7] : memref<27x8x128xf32, #tpu.memory_space<vmem>>, vector<1x8x128xf32>
    %7 = vector.shape_cast %6 : vector<1x8x128xf32> to vector<8x128xf32>
    %c1 = arith.constant 1 : index
    %c0_8 = arith.constant 0 : index
    %c0_9 = arith.constant 0 : index
    %8 = vector.load %arg1[%c1, %c0_8, %c0_9] : memref<27x8x128xf32, #tpu.memory_space<vmem>>, vector<1x8x128xf32>
    %9 = vector.shape_cast %8 : vector<1x8x128xf32> to vector<8x128xf32>
    %c2 = arith.constant 2 : index
    %c0_10 = arith.constant 0 : index
    %c0_11 = arith.constant 0 : index
    %10 = vector.load %arg1[%c2, %c0_10, %c0_11] : memref<27x8x128xf32, #tpu.memory_space<vmem>>, vector<1x8x128xf32>
    %11 = vector.shape_cast %10 : vector<1x8x128xf32> to vector<8x128xf32>
    %12 = arith.subf %1, %7 : vector<8x128xf32>
    %13 = arith.subf %3, %9 : vector<8x128xf32>
    %14 = arith.subf %5, %11 : vector<8x128xf32>
    %15 = arith.mulf %12, %12 : vector<8x128xf32>
    %16 = arith.mulf %13, %13 : vector<8x128xf32>
    %17 = arith.addf %15, %16 : vector<8x128xf32>
    %18 = arith.mulf %14, %14 : vector<8x128xf32>
    %19 = arith.addf %17, %18 : vector<8x128xf32>
    %cst = arith.constant 9.99999996E-13 : f32
    %20 = vector.broadcast %cst : f32 to vector<8x128xf32>
    %21 = arith.addf %19, %20 : vector<8x128xf32>
    %22 = math.sqrt %21 : vector<8x128xf32>
    %c2_12 = arith.constant 2 : index
    %c0_13 = arith.constant 0 : index
    %c0_14 = arith.constant 0 : index
    %23 = vector.load %arg2[%c2_12, %c0_13, %c0_14] : memref<11x8x128xf32, #tpu.memory_space<vmem>>, vector<1x8x128xf32>
    %24 = vector.shape_cast %23 : vector<1x8x128xf32> to vector<8x128xf32>
    %c0_15 = arith.constant 0 : index
    %c0_16 = arith.constant 0 : index
    %c0_17 = arith.constant 0 : index
    %25 = vector.load %arg2[%c0_15, %c0_16, %c0_17] : memref<11x8x128xf32, #tpu.memory_space<vmem>>, vector<1x8x128xf32>
    %26 = vector.shape_cast %25 : vector<1x8x128xf32> to vector<8x128xf32>
    %27 = arith.mulf %24, %26 : vector<8x128xf32>
    %c1_18 = arith.constant 1 : index
    %c0_19 = arith.constant 0 : index
    %c0_20 = arith.constant 0 : index
    %28 = vector.load %arg2[%c1_18, %c0_19, %c0_20] : memref<11x8x128xf32, #tpu.memory_space<vmem>>, vector<1x8x128xf32>
    %29 = vector.shape_cast %28 : vector<1x8x128xf32> to vector<8x128xf32>
    %30 = arith.subf %22, %29 : vector<8x128xf32>
    %31 = arith.mulf %30, %30 : vector<8x128xf32>
    %32 = arith.mulf %27, %31 : vector<8x128xf32>
    %c9 = arith.constant 9 : index
    %c0_21 = arith.constant 0 : index
    %c0_22 = arith.constant 0 : index
    %33 = vector.load %arg1[%c9, %c0_21, %c0_22] : memref<27x8x128xf32, #tpu.memory_space<vmem>>, vector<1x8x128xf32>
    %34 = vector.shape_cast %33 : vector<1x8x128xf32> to vector<8x128xf32>
    %c10 = arith.constant 10 : index
    %c0_23 = arith.constant 0 : index
    %c0_24 = arith.constant 0 : index
    %35 = vector.load %arg1[%c10, %c0_23, %c0_24] : memref<27x8x128xf32, #tpu.memory_space<vmem>>, vector<1x8x128xf32>
    %36 = vector.shape_cast %35 : vector<1x8x128xf32> to vector<8x128xf32>
    %c11 = arith.constant 11 : index
    %c0_25 = arith.constant 0 : index
    %c0_26 = arith.constant 0 : index
    %37 = vector.load %arg1[%c11, %c0_25, %c0_26] : memref<27x8x128xf32, #tpu.memory_space<vmem>>, vector<1x8x128xf32>
    %38 = vector.shape_cast %37 : vector<1x8x128xf32> to vector<8x128xf32>
    %c6 = arith.constant 6 : index
    %c0_27 = arith.constant 0 : index
    %c0_28 = arith.constant 0 : index
    %39 = vector.load %arg1[%c6, %c0_27, %c0_28] : memref<27x8x128xf32, #tpu.memory_space<vmem>>, vector<1x8x128xf32>
    %40 = vector.shape_cast %39 : vector<1x8x128xf32> to vector<8x128xf32>
    %c7 = arith.constant 7 : index
    %c0_29 = arith.constant 0 : index
    %c0_30 = arith.constant 0 : index
    %41 = vector.load %arg1[%c7, %c0_29, %c0_30] : memref<27x8x128xf32, #tpu.memory_space<vmem>>, vector<1x8x128xf32>
    %42 = vector.shape_cast %41 : vector<1x8x128xf32> to vector<8x128xf32>
    %c8 = arith.constant 8 : index
    %c0_31 = arith.constant 0 : index
    %c0_32 = arith.constant 0 : index
    %43 = vector.load %arg1[%c8, %c0_31, %c0_32] : memref<27x8x128xf32, #tpu.memory_space<vmem>>, vector<1x8x128xf32>
    %44 = vector.shape_cast %43 : vector<1x8x128xf32> to vector<8x128xf32>
    %45 = arith.subf %40, %34 : vector<8x128xf32>
    %46 = arith.subf %42, %36 : vector<8x128xf32>
    %47 = arith.subf %44, %38 : vector<8x128xf32>
    %c12 = arith.constant 12 : index
    %c0_33 = arith.constant 0 : index
    %c0_34 = arith.constant 0 : index
    %48 = vector.load %arg1[%c12, %c0_33, %c0_34] : memref<27x8x128xf32, #tpu.memory_space<vmem>>, vector<1x8x128xf32>
    %49 = vector.shape_cast %48 : vector<1x8x128xf32> to vector<8x128xf32>
    %c13 = arith.constant 13 : index
    %c0_35 = arith.constant 0 : index
    %c0_36 = arith.constant 0 : index
    %50 = vector.load %arg1[%c13, %c0_35, %c0_36] : memref<27x8x128xf32, #tpu.memory_space<vmem>>, vector<1x8x128xf32>
    %51 = vector.shape_cast %50 : vector<1x8x128xf32> to vector<8x128xf32>
    %c14 = arith.constant 14 : index
    %c0_37 = arith.constant 0 : index
    %c0_38 = arith.constant 0 : index
    %52 = vector.load %arg1[%c14, %c0_37, %c0_38] : memref<27x8x128xf32, #tpu.memory_space<vmem>>, vector<1x8x128xf32>
    %53 = vector.shape_cast %52 : vector<1x8x128xf32> to vector<8x128xf32>
    %54 = arith.subf %49, %34 : vector<8x128xf32>
    %55 = arith.subf %51, %36 : vector<8x128xf32>
    %56 = arith.subf %53, %38 : vector<8x128xf32>
    %57 = arith.mulf %45, %54 : vector<8x128xf32>
    %58 = arith.mulf %46, %55 : vector<8x128xf32>
    %59 = arith.addf %57, %58 : vector<8x128xf32>
    %60 = arith.mulf %47, %56 : vector<8x128xf32>
    %61 = arith.addf %59, %60 : vector<8x128xf32>
    %62 = arith.mulf %45, %45 : vector<8x128xf32>
    %63 = arith.mulf %46, %46 : vector<8x128xf32>
    %64 = arith.addf %62, %63 : vector<8x128xf32>
    %65 = arith.mulf %47, %47 : vector<8x128xf32>
    %66 = arith.addf %64, %65 : vector<8x128xf32>
    %67 = arith.mulf %54, %54 : vector<8x128xf32>
    %68 = arith.mulf %55, %55 : vector<8x128xf32>
    %69 = arith.addf %67, %68 : vector<8x128xf32>
    %70 = arith.mulf %56, %56 : vector<8x128xf32>
    %71 = arith.addf %69, %70 : vector<8x128xf32>
    %72 = arith.mulf %66, %71 : vector<8x128xf32>
    %cst_39 = arith.constant 9.99999996E-13 : f32
    %73 = vector.broadcast %cst_39 : f32 to vector<8x128xf32>
    %74 = arith.addf %72, %73 : vector<8x128xf32>
    %75 = math.rsqrt %74 : vector<8x128xf32>
    %76 = arith.mulf %61, %75 : vector<8x128xf32>
    %c5_40 = arith.constant 5 : index
    %c0_41 = arith.constant 0 : index
    %c0_42 = arith.constant 0 : index
    %77 = vector.load %arg2[%c5_40, %c0_41, %c0_42] : memref<11x8x128xf32, #tpu.memory_space<vmem>>, vector<1x8x128xf32>
    %78 = vector.shape_cast %77 : vector<1x8x128xf32> to vector<8x128xf32>
    %c3_43 = arith.constant 3 : index
    %c0_44 = arith.constant 0 : index
    %c0_45 = arith.constant 0 : index
    %79 = vector.load %arg2[%c3_43, %c0_44, %c0_45] : memref<11x8x128xf32, #tpu.memory_space<vmem>>, vector<1x8x128xf32>
    %80 = vector.shape_cast %79 : vector<1x8x128xf32> to vector<8x128xf32>
    %81 = arith.mulf %78, %80 : vector<8x128xf32>
    %c4_46 = arith.constant 4 : index
    %c0_47 = arith.constant 0 : index
    %c0_48 = arith.constant 0 : index
    %82 = vector.load %arg2[%c4_46, %c0_47, %c0_48] : memref<11x8x128xf32, #tpu.memory_space<vmem>>, vector<1x8x128xf32>
    %83 = vector.shape_cast %82 : vector<1x8x128xf32> to vector<8x128xf32>
    %84 = arith.subf %76, %83 : vector<8x128xf32>
    %85 = arith.mulf %84, %84 : vector<8x128xf32>
    %86 = arith.mulf %81, %85 : vector<8x128xf32>
    %c15 = arith.constant 15 : index
    %c0_49 = arith.constant 0 : index
    %c0_50 = arith.constant 0 : index
    %87 = vector.load %arg1[%c15, %c0_49, %c0_50] : memref<27x8x128xf32, #tpu.memory_space<vmem>>, vector<1x8x128xf32>
    %88 = vector.shape_cast %87 : vector<1x8x128xf32> to vector<8x128xf32>
    %c16 = arith.constant 16 : index
    %c0_51 = arith.constant 0 : index
    %c0_52 = arith.constant 0 : index
    %89 = vector.load %arg1[%c16, %c0_51, %c0_52] : memref<27x8x128xf32, #tpu.memory_space<vmem>>, vector<1x8x128xf32>
    %90 = vector.shape_cast %89 : vector<1x8x128xf32> to vector<8x128xf32>
    %c17 = arith.constant 17 : index
    %c0_53 = arith.constant 0 : index
    %c0_54 = arith.constant 0 : index
    %91 = vector.load %arg1[%c17, %c0_53, %c0_54] : memref<27x8x128xf32, #tpu.memory_space<vmem>>, vector<1x8x128xf32>
    %92 = vector.shape_cast %91 : vector<1x8x128xf32> to vector<8x128xf32>
    %c18 = arith.constant 18 : index
    %c0_55 = arith.constant 0 : index
    %c0_56 = arith.constant 0 : index
    %93 = vector.load %arg1[%c18, %c0_55, %c0_56] : memref<27x8x128xf32, #tpu.memory_space<vmem>>, vector<1x8x128xf32>
    %94 = vector.shape_cast %93 : vector<1x8x128xf32> to vector<8x128xf32>
    %c19 = arith.constant 19 : index
    %c0_57 = arith.constant 0 : index
    %c0_58 = arith.constant 0 : index
    %95 = vector.load %arg1[%c19, %c0_57, %c0_58] : memref<27x8x128xf32, #tpu.memory_space<vmem>>, vector<1x8x128xf32>
    %96 = vector.shape_cast %95 : vector<1x8x128xf32> to vector<8x128xf32>
    %c20 = arith.constant 20 : index
    %c0_59 = arith.constant 0 : index
    %c0_60 = arith.constant 0 : index
    %97 = vector.load %arg1[%c20, %c0_59, %c0_60] : memref<27x8x128xf32, #tpu.memory_space<vmem>>, vector<1x8x128xf32>
    %98 = vector.shape_cast %97 : vector<1x8x128xf32> to vector<8x128xf32>
    %c21 = arith.constant 21 : index
    %c0_61 = arith.constant 0 : index
    %c0_62 = arith.constant 0 : index
    %99 = vector.load %arg1[%c21, %c0_61, %c0_62] : memref<27x8x128xf32, #tpu.memory_space<vmem>>, vector<1x8x128xf32>
    %100 = vector.shape_cast %99 : vector<1x8x128xf32> to vector<8x128xf32>
    %c22 = arith.constant 22 : index
    %c0_63 = arith.constant 0 : index
    %c0_64 = arith.constant 0 : index
    %101 = vector.load %arg1[%c22, %c0_63, %c0_64] : memref<27x8x128xf32, #tpu.memory_space<vmem>>, vector<1x8x128xf32>
    %102 = vector.shape_cast %101 : vector<1x8x128xf32> to vector<8x128xf32>
    %c23 = arith.constant 23 : index
    %c0_65 = arith.constant 0 : index
    %c0_66 = arith.constant 0 : index
    %103 = vector.load %arg1[%c23, %c0_65, %c0_66] : memref<27x8x128xf32, #tpu.memory_space<vmem>>, vector<1x8x128xf32>
    %104 = vector.shape_cast %103 : vector<1x8x128xf32> to vector<8x128xf32>
    %c24 = arith.constant 24 : index
    %c0_67 = arith.constant 0 : index
    %c0_68 = arith.constant 0 : index
    %105 = vector.load %arg1[%c24, %c0_67, %c0_68] : memref<27x8x128xf32, #tpu.memory_space<vmem>>, vector<1x8x128xf32>
    %106 = vector.shape_cast %105 : vector<1x8x128xf32> to vector<8x128xf32>
    %c25 = arith.constant 25 : index
    %c0_69 = arith.constant 0 : index
    %c0_70 = arith.constant 0 : index
    %107 = vector.load %arg1[%c25, %c0_69, %c0_70] : memref<27x8x128xf32, #tpu.memory_space<vmem>>, vector<1x8x128xf32>
    %108 = vector.shape_cast %107 : vector<1x8x128xf32> to vector<8x128xf32>
    %c26 = arith.constant 26 : index
    %c0_71 = arith.constant 0 : index
    %c0_72 = arith.constant 0 : index
    %109 = vector.load %arg1[%c26, %c0_71, %c0_72] : memref<27x8x128xf32, #tpu.memory_space<vmem>>, vector<1x8x128xf32>
    %110 = vector.shape_cast %109 : vector<1x8x128xf32> to vector<8x128xf32>
    %111 = arith.subf %94, %88 : vector<8x128xf32>
    %112 = arith.subf %96, %90 : vector<8x128xf32>
    %113 = arith.subf %98, %92 : vector<8x128xf32>
    %114 = arith.subf %100, %94 : vector<8x128xf32>
    %115 = arith.subf %102, %96 : vector<8x128xf32>
    %116 = arith.subf %104, %98 : vector<8x128xf32>
    %117 = arith.subf %106, %100 : vector<8x128xf32>
    %118 = arith.subf %108, %102 : vector<8x128xf32>
    %119 = arith.subf %110, %104 : vector<8x128xf32>
    %120 = arith.mulf %112, %116 : vector<8x128xf32>
    %121 = arith.mulf %113, %115 : vector<8x128xf32>
    %122 = arith.subf %120, %121 : vector<8x128xf32>
    %123 = arith.mulf %113, %114 : vector<8x128xf32>
    %124 = arith.mulf %111, %116 : vector<8x128xf32>
    %125 = arith.subf %123, %124 : vector<8x128xf32>
    %126 = arith.mulf %111, %115 : vector<8x128xf32>
    %127 = arith.mulf %112, %114 : vector<8x128xf32>
    %128 = arith.subf %126, %127 : vector<8x128xf32>
    %129 = arith.mulf %115, %119 : vector<8x128xf32>
    %130 = arith.mulf %116, %118 : vector<8x128xf32>
    %131 = arith.subf %129, %130 : vector<8x128xf32>
    %132 = arith.mulf %116, %117 : vector<8x128xf32>
    %133 = arith.mulf %114, %119 : vector<8x128xf32>
    %134 = arith.subf %132, %133 : vector<8x128xf32>
    %135 = arith.mulf %114, %118 : vector<8x128xf32>
    %136 = arith.mulf %115, %117 : vector<8x128xf32>
    %137 = arith.subf %135, %136 : vector<8x128xf32>
    %138 = arith.mulf %122, %131 : vector<8x128xf32>
    %139 = arith.mulf %125, %134 : vector<8x128xf32>
    %140 = arith.addf %138, %139 : vector<8x128xf32>
    %141 = arith.mulf %128, %137 : vector<8x128xf32>
    %142 = arith.addf %140, %141 : vector<8x128xf32>
    %143 = arith.mulf %125, %137 : vector<8x128xf32>
    %144 = arith.mulf %128, %134 : vector<8x128xf32>
    %145 = arith.subf %143, %144 : vector<8x128xf32>
    %146 = arith.mulf %128, %131 : vector<8x128xf32>
    %147 = arith.mulf %122, %137 : vector<8x128xf32>
    %148 = arith.subf %146, %147 : vector<8x128xf32>
    %149 = arith.mulf %122, %134 : vector<8x128xf32>
    %150 = arith.mulf %125, %131 : vector<8x128xf32>
    %151 = arith.subf %149, %150 : vector<8x128xf32>
    %152 = arith.mulf %145, %114 : vector<8x128xf32>
    %153 = arith.mulf %148, %115 : vector<8x128xf32>
    %154 = arith.addf %152, %153 : vector<8x128xf32>
    %155 = arith.mulf %151, %116 : vector<8x128xf32>
    %156 = arith.addf %154, %155 : vector<8x128xf32>
    %157 = arith.mulf %114, %114 : vector<8x128xf32>
    %158 = arith.mulf %115, %115 : vector<8x128xf32>
    %159 = arith.addf %157, %158 : vector<8x128xf32>
    %160 = arith.mulf %116, %116 : vector<8x128xf32>
    %161 = arith.addf %159, %160 : vector<8x128xf32>
    %cst_73 = arith.constant 9.99999996E-13 : f32
    %162 = vector.broadcast %cst_73 : f32 to vector<8x128xf32>
    %163 = arith.addf %161, %162 : vector<8x128xf32>
    %164 = math.rsqrt %163 : vector<8x128xf32>
    %165 = arith.mulf %156, %164 : vector<8x128xf32>
    %166 = arith.mulf %142, %142 : vector<8x128xf32>
    %167 = arith.mulf %165, %165 : vector<8x128xf32>
    %168 = arith.addf %166, %167 : vector<8x128xf32>
    %cst_74 = arith.constant 9.99999996E-13 : f32
    %169 = vector.broadcast %cst_74 : f32 to vector<8x128xf32>
    %170 = arith.addf %168, %169 : vector<8x128xf32>
    %171 = math.rsqrt %170 : vector<8x128xf32>
    %172 = arith.mulf %142, %171 : vector<8x128xf32>
    %173 = arith.mulf %165, %171 : vector<8x128xf32>
    %cst_75 = arith.constant 2.000000e+00 : f32
    %174 = vector.broadcast %cst_75 : f32 to vector<8x128xf32>
    %175 = arith.mulf %174, %172 : vector<8x128xf32>
    %176 = arith.mulf %175, %172 : vector<8x128xf32>
    %cst_76 = arith.constant 1.000000e+00 : f32
    %177 = vector.broadcast %cst_76 : f32 to vector<8x128xf32>
    %178 = arith.subf %176, %177 : vector<8x128xf32>
    %cst_77 = arith.constant 2.000000e+00 : f32
    %179 = vector.broadcast %cst_77 : f32 to vector<8x128xf32>
    %180 = arith.mulf %179, %173 : vector<8x128xf32>
    %181 = arith.mulf %180, %172 : vector<8x128xf32>
    %cst_78 = arith.constant 2.000000e+00 : f32
    %182 = vector.broadcast %cst_78 : f32 to vector<8x128xf32>
    %183 = arith.mulf %182, %172 : vector<8x128xf32>
    %184 = arith.mulf %183, %178 : vector<8x128xf32>
    %185 = arith.subf %184, %172 : vector<8x128xf32>
    %cst_79 = arith.constant 2.000000e+00 : f32
    %186 = vector.broadcast %cst_79 : f32 to vector<8x128xf32>
    %187 = arith.mulf %186, %172 : vector<8x128xf32>
    %188 = arith.mulf %187, %181 : vector<8x128xf32>
    %189 = arith.subf %188, %173 : vector<8x128xf32>
    %cst_80 = arith.constant 2.000000e+00 : f32
    %190 = vector.broadcast %cst_80 : f32 to vector<8x128xf32>
    %191 = arith.mulf %190, %172 : vector<8x128xf32>
    %192 = arith.mulf %191, %185 : vector<8x128xf32>
    %193 = arith.subf %192, %178 : vector<8x128xf32>
    %cst_81 = arith.constant 2.000000e+00 : f32
    %194 = vector.broadcast %cst_81 : f32 to vector<8x128xf32>
    %195 = arith.mulf %194, %172 : vector<8x128xf32>
    %196 = arith.mulf %195, %189 : vector<8x128xf32>
    %197 = arith.subf %196, %181 : vector<8x128xf32>
    %c7_82 = arith.constant 7 : index
    %c0_83 = arith.constant 0 : index
    %c0_84 = arith.constant 0 : index
    %198 = vector.load %arg2[%c7_82, %c0_83, %c0_84] : memref<11x8x128xf32, #tpu.memory_space<vmem>>, vector<1x8x128xf32>
    %199 = vector.shape_cast %198 : vector<1x8x128xf32> to vector<8x128xf32>
    %cst_85 = arith.constant 3.500000e+00 : f32
    %200 = vector.broadcast %cst_85 : f32 to vector<8x128xf32>
    %201 = arith.cmpf oge, %199, %200 : vector<8x128xf32>
    %cst_86 = arith.constant 2.500000e+00 : f32
    %202 = vector.broadcast %cst_86 : f32 to vector<8x128xf32>
    %203 = arith.cmpf oge, %199, %202 : vector<8x128xf32>
    %cst_87 = arith.constant 1.500000e+00 : f32
    %204 = vector.broadcast %cst_87 : f32 to vector<8x128xf32>
    %205 = arith.cmpf oge, %199, %204 : vector<8x128xf32>
    %206 = arith.select %205, %178, %172 : vector<8x128xi1>, vector<8x128xf32>
    %207 = arith.select %203, %185, %206 : vector<8x128xi1>, vector<8x128xf32>
    %208 = arith.select %201, %193, %207 : vector<8x128xi1>, vector<8x128xf32>
    %cst_88 = arith.constant 3.500000e+00 : f32
    %209 = vector.broadcast %cst_88 : f32 to vector<8x128xf32>
    %210 = arith.cmpf oge, %199, %209 : vector<8x128xf32>
    %cst_89 = arith.constant 2.500000e+00 : f32
    %211 = vector.broadcast %cst_89 : f32 to vector<8x128xf32>
    %212 = arith.cmpf oge, %199, %211 : vector<8x128xf32>
    %cst_90 = arith.constant 1.500000e+00 : f32
    %213 = vector.broadcast %cst_90 : f32 to vector<8x128xf32>
    %214 = arith.cmpf oge, %199, %213 : vector<8x128xf32>
    %215 = arith.select %214, %181, %173 : vector<8x128xi1>, vector<8x128xf32>
    %216 = arith.select %212, %189, %215 : vector<8x128xi1>, vector<8x128xf32>
    %217 = arith.select %210, %197, %216 : vector<8x128xi1>, vector<8x128xf32>
    %c8_91 = arith.constant 8 : index
    %c0_92 = arith.constant 0 : index
    %c0_93 = arith.constant 0 : index
    %218 = vector.load %arg2[%c8_91, %c0_92, %c0_93] : memref<11x8x128xf32, #tpu.memory_space<vmem>>, vector<1x8x128xf32>
    %219 = vector.shape_cast %218 : vector<1x8x128xf32> to vector<8x128xf32>
    %220 = arith.mulf %208, %219 : vector<8x128xf32>
    %c9_94 = arith.constant 9 : index
    %c0_95 = arith.constant 0 : index
    %c0_96 = arith.constant 0 : index
    %221 = vector.load %arg2[%c9_94, %c0_95, %c0_96] : memref<11x8x128xf32, #tpu.memory_space<vmem>>, vector<1x8x128xf32>
    %222 = vector.shape_cast %221 : vector<1x8x128xf32> to vector<8x128xf32>
    %223 = arith.mulf %217, %222 : vector<8x128xf32>
    %224 = arith.addf %220, %223 : vector<8x128xf32>
    %c10_97 = arith.constant 10 : index
    %c0_98 = arith.constant 0 : index
    %c0_99 = arith.constant 0 : index
    %225 = vector.load %arg2[%c10_97, %c0_98, %c0_99] : memref<11x8x128xf32, #tpu.memory_space<vmem>>, vector<1x8x128xf32>
    %226 = vector.shape_cast %225 : vector<1x8x128xf32> to vector<8x128xf32>
    %c6_100 = arith.constant 6 : index
    %c0_101 = arith.constant 0 : index
    %c0_102 = arith.constant 0 : index
    %227 = vector.load %arg2[%c6_100, %c0_101, %c0_102] : memref<11x8x128xf32, #tpu.memory_space<vmem>>, vector<1x8x128xf32>
    %228 = vector.shape_cast %227 : vector<1x8x128xf32> to vector<8x128xf32>
    %229 = arith.mulf %226, %228 : vector<8x128xf32>
    %cst_103 = arith.constant 1.000000e+00 : f32
    %230 = vector.broadcast %cst_103 : f32 to vector<8x128xf32>
    %231 = arith.addf %230, %224 : vector<8x128xf32>
    %232 = arith.mulf %229, %231 : vector<8x128xf32>
    %233 = arith.addf %32, %86 : vector<8x128xf32>
    %234 = arith.addf %233, %232 : vector<8x128xf32>
    %cst_104 = arith.constant dense<0.000000e+00> : vector<8xf32>
    %235 = vector.multi_reduction <add>, %234, %cst_104 [1] : vector<8x128xf32> to vector<8xf32>
    %236 = vector.shape_cast %235 : vector<8xf32> to vector<8x1xf32>
    %c0_105 = arith.constant 0 : index
    %c0_106 = arith.constant 0 : index
    %237 = vector.load %arg3[%c0_105, %c0_106] : memref<8x1xf32, #tpu.memory_space<vmem>>, vector<8x1xf32>
    tpu.vector_store %arg3[%c0_105, %c0_106], %236 {strides = array<i32>} : memref<8x1xf32, #tpu.memory_space<vmem>>, vector<8x1xf32>,
    return
  }
  func.func @transform_0(%arg0: i32) -> (i32, i32, i32) {
    %c0_i32 = arith.constant 0 : i32
    %c0_i32_0 = arith.constant 0 : i32
    %c0_i32_1 = arith.constant 0 : i32
    return %c0_i32, %arg0, %c0_i32_0 : i32, i32, i32
  }
  func.func @transform_1(%arg0: i32) -> (i32, i32, i32) {
    %c0_i32 = arith.constant 0 : i32
    %c0_i32_0 = arith.constant 0 : i32
    %c0_i32_1 = arith.constant 0 : i32
    return %c0_i32, %arg0, %c0_i32_0 : i32, i32, i32
  }
  func.func @transform_2(%arg0: i32) -> (i32, i32) {
    %c0_i32 = arith.constant 0 : i32
    %c0_i32_0 = arith.constant 0 : i32
    return %arg0, %c0_i32 : i32, i32
  }
}

</mosaic_0001>

<llo_original>
// kernel: tpu_custom_call.1
$region0: #{tpu_custom_call.1}
  #allocation0 [shape = 'u32[]', space=smem, size = 0x4, offset = 0x4, fixed_abs, tag = 'smem constant byte address 0x4 - core index']
  #allocation1 [shape = 'u32[144,128]{1,0:T(1,128)}', space=vmem, size = 0x12000, scoped, tag = 'internal scratch']
  %s0 = inlined_call_operand.hbm [shape: f32[27,8,128], index: 0, kind: input, shape index: {}]
  %s1 = inlined_call_operand.hbm [shape: f32[11,8,128], index: 1, kind: input, shape index: {}]
  %s2 = inlined_call_operand.vmem [shape: f32[8,1], index: 2, kind: output, shape index: {}]
  %s3 = sld [smem:[#allocation0]]
  $region26: #{tpu_custom_call.1} parent=0
    _
  %s5 = ssub.s32 1, %s3
  %s6 = scalar_select 0, %s5, %s3
  $region1: #{tpu_custom_call.1} parent=0
    #allocation2 [shape = 'u8[110592]{0}', space=vmem, size = 0x1b000, scoped, tag = 'input window, operand 0, single buffered']
    #allocation3 [shape = 's32[1]{0}', space=sflag, size = 0x4, scoped, tag = 'scoped memory for tpu_custom_call.1']
    #allocation4 [shape = 'u8[45056]{0}', space=vmem, size = 0xb000, scoped, tag = 'input window, operand 1, single buffered']
    #allocation5 [shape = 's32[1]{0}', space=sflag, size = 0x4, scoped, tag = 'scoped memory for tpu_custom_call.1']
    %7 = vsyncpa [#allocation3], 0
    %8 = vsyncpa [#allocation5], 0
    // Predicated region
    $region2: #{tpu_custom_call.1} parent=1 // pred_check
      _
    $region3: #{tpu_custom_call.1} parent=1 // pred_check_branch
      %10 = sbr.rel (0) target = $region5
    $region4: #{tpu_custom_call.1} parent=1 // pred_region
      %s12 = ssub.s32 3456, 3456
      %13 = vsyncadd [#allocation3], %s12
      %s14 = sshll.u32 [#allocation2], 4
      %s15 = int_to_ptr.vmem [resolvable:$true] %s14
      %20 = dma.hbm_to_vmem [thread:$0]  %s0, 3456, %s15, [#allocation3], 128, 128, 8
    $region5: #{tpu_custom_call.1} parent=1 // pred_fallthru
      _
    // Predicated region
    $region6: #{tpu_custom_call.1} parent=1 // pred_check
      _
    $region7: #{tpu_custom_call.1} parent=1 // pred_check_branch
      %22 = sbr.rel (0) target = $region9
    $region8: #{tpu_custom_call.1} parent=1 // pred_region
      %s24 = ssub.s32 1408, 1408
      %25 = vsyncadd [#allocation5], %s24
      %s26 = sshll.u32 [#allocation4], 4
      %s27 = int_to_ptr.vmem [resolvable:$true] %s26
      %32 = dma.hbm_to_vmem [thread:$0]  %s1, 1408, %s27, [#allocation5], 128, 128, 8
    $region9: #{tpu_custom_call.1} parent=1 // pred_fallthru
      _
    // Predicated region
    $region10: #{tpu_custom_call.1} parent=1 // pred_check
      _
    $region11: #{tpu_custom_call.1} parent=1 // pred_check_branch
      %34 = sbr.rel (0) target = $region13
    $region12: #{tpu_custom_call.1} parent=1 // pred_region
      %35 = dma.done [#allocation3], 3456
    $region13: #{tpu_custom_call.1} parent=1 // pred_fallthru
      _
    // Predicated region
    $region14: #{tpu_custom_call.1} parent=1 // pred_check
      _
    $region15: #{tpu_custom_call.1} parent=1 // pred_check_branch
      %37 = sbr.rel (0) target = $region17
    $region16: #{tpu_custom_call.1} parent=1 // pred_region
      %38 = dma.done [#allocation5], 1408
    $region17: #{tpu_custom_call.1} parent=1 // pred_fallthru
      _
    %s39 = scalar_lea.vmem [#allocation2], 24
    %v40 = vld [vmem:[%s39] sm:$0xff]
    %s41 = scalar_lea.vmem [#allocation2], 32
    %v42 = vld [vmem:[%s41] sm:$0xff]
    %s43 = scalar_lea.vmem [#allocation2], 40
    %v44 = vld [vmem:[%s43] sm:$0xff]
    %v45 = vld [vmem:[#allocation2] sm:$0xff]
    %s46 = scalar_lea.vmem [#allocation2], 8
    %v47 = vld [vmem:[%s46] sm:$0xff]
    %s48 = scalar_lea.vmem [#allocation2], 16
    %v49 = vld [vmem:[%s48] sm:$0xff]
    %v50 = vsub.f32 %v40, %v45
    %v51 = vsub.f32 %v42, %v47
    %v52 = vsub.f32 %v44, %v49
    %v53 = vmul.f32 %v50, %v50
    %v54 = vmul.f32 %v51, %v51
    %v55 = vadd.f32 %v53, %v54
    %v56 = vmul.f32 %v52, %v52
    %v57 = vadd.f32 %v55, %v56
    %v58 = vadd.f32 %v57, 1e-12
    %v59 = vrsqrt.pop %v58
    %v60 = vmul.f32 %v58, %v59
    %vm61 = vcmp.eq.f32.partialorder %v58, inf
    %v62 = vsel %vm61, %v58, %v60
    %vm63 = vcmp.eq.f32.partialorder %v58, 0.0
    %v64 = vand.u32 %v58, 2147483648
    %v65 = vsel %vm63, %v64, %v62
    %s66 = scalar_lea.vmem [#allocation4], 16
    %v67 = vld [vmem:[%s66] sm:$0xff]
    %v68 = vld [vmem:[#allocation4] sm:$0xff]
    %v69 = vmul.f32 %v67, %v68
    %s70 = scalar_lea.vmem [#allocation4], 8
    %v71 = vld [vmem:[%s70] sm:$0xff]
    %v72 = vsub.f32 %v65, %v71
    %v73 = vmul.f32 %v72, %v72
    %v74 = vmul.f32 %v69, %v73
    %s75 = scalar_lea.vmem [#allocation2], 72
    %v76 = vld [vmem:[%s75] sm:$0xff]
    %s77 = scalar_lea.vmem [#allocation2], 80
    %v78 = vld [vmem:[%s77] sm:$0xff]
    %s79 = scalar_lea.vmem [#allocation2], 88
    %v80 = vld [vmem:[%s79] sm:$0xff]
    %s81 = scalar_lea.vmem [#allocation2], 48
    %v82 = vld [vmem:[%s81] sm:$0xff]
    %s83 = scalar_lea.vmem [#allocation2], 56
    %v84 = vld [vmem:[%s83] sm:$0xff]
    %s85 = scalar_lea.vmem [#allocation2], 64
    %v86 = vld [vmem:[%s85] sm:$0xff]
    %v87 = vsub.f32 %v82, %v76
    %v88 = vsub.f32 %v84, %v78
    %v89 = vsub.f32 %v86, %v80
    %s90 = scalar_lea.vmem [#allocation2], 96
    %v91 = vld [vmem:[%s90] sm:$0xff]
    %s92 = scalar_lea.vmem [#allocation2], 104
    %v93 = vld [vmem:[%s92] sm:$0xff]
    %s94 = scalar_lea.vmem [#allocation2], 112
    %v95 = vld [vmem:[%s94] sm:$0xff]
    %v96 = vsub.f32 %v91, %v76
    %v97 = vsub.f32 %v93, %v78
    %v98 = vsub.f32 %v95, %v80
    %v99 = vmul.f32 %v87, %v96
    %v100 = vmul.f32 %v88, %v97
    %v101 = vadd.f32 %v99, %v100
    %v102 = vmul.f32 %v89, %v98
    %v103 = vadd.f32 %v101, %v102
    %v104 = vmul.f32 %v87, %v87
    %v105 = vmul.f32 %v88, %v88
    %v106 = vadd.f32 %v104, %v105
    %v107 = vmul.f32 %v89, %v89
    %v108 = vadd.f32 %v106, %v107
    %v109 = vmul.f32 %v96, %v96
    %v110 = vmul.f32 %v97, %v97
    %v111 = vadd.f32 %v109, %v110
    %v112 = vmul.f32 %v98, %v98
    %v113 = vadd.f32 %v111, %v112
    %v114 = vmul.f32 %v108, %v113
    %v115 = vadd.f32 %v114, 1e-12
    %v116 = vrsqrt.pop %v115
    %v117 = vmul.f32 %v103, %v116
    %s118 = scalar_lea.vmem [#allocation4], 40
    %v119 = vld [vmem:[%s118] sm:$0xff]
    %s120 = scalar_lea.vmem [#allocation4], 24
    %v121 = vld [vmem:[%s120] sm:$0xff]
    %v122 = vmul.f32 %v119, %v121
    %s123 = scalar_lea.vmem [#allocation4], 32
    %v124 = vld [vmem:[%s123] sm:$0xff]
    %v125 = vsub.f32 %v117, %v124
    %v126 = vmul.f32 %v125, %v125
    %v127 = vmul.f32 %v122, %v126
    %s128 = scalar_lea.vmem [#allocation2], 120
    %v129 = vld [vmem:[%s128] sm:$0xff]
    %s130 = scalar_lea.vmem [#allocation2], 128
    %v131 = vld [vmem:[%s130] sm:$0xff]
    %s132 = scalar_lea.vmem [#allocation2], 136
    %v133 = vld [vmem:[%s132] sm:$0xff]
    %s134 = scalar_lea.vmem [#allocation2], 144
    %v135 = vld [vmem:[%s134] sm:$0xff]
    %s136 = scalar_lea.vmem [#allocation2], 152
    %v137 = vld [vmem:[%s136] sm:$0xff]
    %s138 = scalar_lea.vmem [#allocation2], 160
    %v139 = vld [vmem:[%s138] sm:$0xff]
    %s140 = scalar_lea.vmem [#allocation2], 168
    %v141 = vld [vmem:[%s140] sm:$0xff]
    %s142 = scalar_lea.vmem [#allocation2], 176
    %v143 = vld [vmem:[%s142] sm:$0xff]
    %s144 = scalar_lea.vmem [#allocation2], 184
    %v145 = vld [vmem:[%s144] sm:$0xff]
    %s146 = scalar_lea.vmem [#allocation2], 192
    %v147 = vld [vmem:[%s146] sm:$0xff]
    %s148 = scalar_lea.vmem [#allocation2], 200
    %v149 = vld [vmem:[%s148] sm:$0xff]
    %s150 = scalar_lea.vmem [#allocation2], 208
    %v151 = vld [vmem:[%s150] sm:$0xff]
    %v152 = vsub.f32 %v135, %v129
    %v153 = vsub.f32 %v137, %v131
    %v154 = vsub.f32 %v139, %v133
    %v155 = vsub.f32 %v141, %v135
    %v156 = vsub.f32 %v143, %v137
    %v157 = vsub.f32 %v145, %v139
    %v158 = vsub.f32 %v147, %v141
    %v159 = vsub.f32 %v149, %v143
    %v160 = vsub.f32 %v151, %v145
    %v161 = vmul.f32 %v153, %v157
    %v162 = vmul.f32 %v154, %v156
    %v163 = vsub.f32 %v161, %v162
    %v164 = vmul.f32 %v154, %v155
    %v165 = vmul.f32 %v152, %v157
    %v166 = vsub.f32 %v164, %v165
    %v167 = vmul.f32 %v152, %v156
    %v168 = vmul.f32 %v153, %v155
    %v169 = vsub.f32 %v167, %v168
    %v170 = vmul.f32 %v156, %v160
    %v171 = vmul.f32 %v157, %v159
    %v172 = vsub.f32 %v170, %v171
    %v173 = vmul.f32 %v157, %v158
    %v174 = vmul.f32 %v155, %v160
    %v175 = vsub.f32 %v173, %v174
    %v176 = vmul.f32 %v155, %v159
    %v177 = vmul.f32 %v156, %v158
    %v178 = vsub.f32 %v176, %v177
    %v179 = vmul.f32 %v163, %v172
    %v180 = vmul.f32 %v166, %v175
    %v181 = vadd.f32 %v179, %v180
    %v182 = vmul.f32 %v169, %v178
    %v183 = vadd.f32 %v181, %v182
    %v184 = vmul.f32 %v166, %v178
    %v185 = vmul.f32 %v169, %v175
    %v186 = vsub.f32 %v184, %v185
    %v187 = vmul.f32 %v169, %v172
    %v188 = vmul.f32 %v163, %v178
    %v189 = vsub.f32 %v187, %v188
    %v190 = vmul.f32 %v163, %v175
    %v191 = vmul.f32 %v166, %v172
    %v192 = vsub.f32 %v190, %v191
    %v193 = vmul.f32 %v186, %v155
    %v194 = vmul.f32 %v189, %v156
    %v195 = vadd.f32 %v193, %v194
    %v196 = vmul.f32 %v192, %v157
    %v197 = vadd.f32 %v195, %v196
    %v198 = vmul.f32 %v155, %v155
    %v199 = vmul.f32 %v156, %v156
    %v200 = vadd.f32 %v198, %v199
    %v201 = vmul.f32 %v157, %v157
    %v202 = vadd.f32 %v200, %v201
    %v203 = vadd.f32 %v202, 1e-12
    %v204 = vrsqrt.pop %v203
    %v205 = vmul.f32 %v197, %v204
    %v206 = vmul.f32 %v183, %v183
    %v207 = vmul.f32 %v205, %v205
    %v208 = vadd.f32 %v206, %v207
    %v209 = vadd.f32 %v208, 1e-12
    %v210 = vrsqrt.pop %v209
    %v211 = vmul.f32 %v183, %v210
    %v212 = vmul.f32 %v205, %v210
    %v213 = vmul.f32 %v211, 2.0
    %v214 = vmul.f32 %v213, %v211
    %v215 = vsub.f32 %v214, 1.0
    %v216 = vmul.f32 %v212, 2.0
    %v217 = vmul.f32 %v216, %v211
    %v218 = vmul.f32 %v213, %v215
    %v219 = vsub.f32 %v218, %v211
    %v220 = vmul.f32 %v213, %v217
    %v221 = vsub.f32 %v220, %v212
    %v222 = vmul.f32 %v213, %v219
    %v223 = vsub.f32 %v222, %v215
    %v224 = vmul.f32 %v213, %v221
    %v225 = vsub.f32 %v224, %v217
    %s226 = scalar_lea.vmem [#allocation4], 56
    %v227 = vld [vmem:[%s226] sm:$0xff]
    %vm228 = vcmp.ge.f32.partialorder %v227, 3.5
    %vm229 = vcmp.ge.f32.partialorder %v227, 2.5
    %vm230 = vcmp.ge.f32.partialorder %v227, 1.5
    %v231 = vsel %vm230, %v215, %v211
    %v232 = vsel %vm229, %v219, %v231
    %v233 = vsel %vm228, %v223, %v232
    %v234 = vsel %vm230, %v217, %v212
    %v235 = vsel %vm229, %v221, %v234
    %v236 = vsel %vm228, %v225, %v235
    %s237 = scalar_lea.vmem [#allocation4], 64
    %v238 = vld [vmem:[%s237] sm:$0xff]
    %v239 = vmul.f32 %v233, %v238
    %s240 = scalar_lea.vmem [#allocation4], 72
    %v241 = vld [vmem:[%s240] sm:$0xff]
    %v242 = vmul.f32 %v236, %v241
    %v243 = vadd.f32 %v239, %v242
    %s244 = scalar_lea.vmem [#allocation4], 80
    %v245 = vld [vmem:[%s244] sm:$0xff]
    %s246 = scalar_lea.vmem [#allocation4], 48
    %v247 = vld [vmem:[%s246] sm:$0xff]
    %v248 = vmul.f32 %v245, %v247
    %v249 = vadd.f32 %v243, 1.0
    %v250 = vmul.f32 %v248, %v249
    %v251 = vadd.f32 %v74, %v127
    %v252 = vadd.f32 %v251, %v250
    %253 = vadd.xlane.f32.xlu0 %v252
    %v254 = vpop.xlane.xlu0 %253
    %vm255 = vcmask 7168
    %256 = vst.msk [vmem:[%s2] sm:$0xff] %vm255, %v254
    // Predicated region
    $region18: #{tpu_custom_call.1} parent=1 // pred_check
      _
    $region19: #{tpu_custom_call.1} parent=1 // pred_check_branch
      %258 = sbr.rel (0) target = $region21
    $region20: #{tpu_custom_call.1} parent=1 // pred_region
      _
    $region21: #{tpu_custom_call.1} parent=1 // pred_fallthru
      _
    // Predicated region
    $region22: #{tpu_custom_call.1} parent=1 // pred_check
      _
    $region23: #{tpu_custom_call.1} parent=1 // pred_check_branch
      %260 = sbr.rel (0) target = $region25
    $region24: #{tpu_custom_call.1} parent=1 // pred_region
      _
    $region25: #{tpu_custom_call.1} parent=1 // pred_fallthru
      _
    %261 = vsyncpa [#allocation3], 1
    %262 = vsyncpa [#allocation5], 1

</llo_original>
